<compile_context>
chip_gen: v5e
topology: v5e:2x2
jax: 0.10.0
libtpu: 0.0.40
codegen_flags: <defaults>
</compile_context>

<pallas_src>
import numpy as np
import jax
import jax.numpy as jnp
from jax.experimental import pallas as pl
from jax.experimental.pallas import tpu as pltpu

_LANES = 128
_TARGET_TILE_BYTES = 2 << 20   # ~2 MiB blocks: deep into the flat part of the
                               # BW-vs-tile curve, VMEM-safe on v5e/v6e/v7x.
_SPLIT_MIN_BYTES = 1 << 20     # below this, a single full block is fine
                               # (grid-splitting for v7x TCs not worth it).


def _resolve_shape(shape, numel):
    """Resolve a single -1 entry exactly like torch.Tensor.view does."""
    shape = tuple(int(s) for s in shape)
    if shape.count(-1) > 1:
        raise ValueError("view: only one dimension can be inferred (-1)")
    if -1 in shape:
        known = 1
        for s in shape:
            if s != -1:
                known *= s
        if known == 0 or numel % known != 0:
            raise ValueError(f"view: cannot reshape {numel} elements into {shape}")
        idx = shape.index(-1)
        shape = shape[:idx] + (numel // known,) + shape[idx + 1:]
    if int(np.prod(shape, dtype=np.int64)) != numel:
        raise ValueError(f"view: shape {shape} is invalid for input of size {numel}")
    return shape


def _copy_kernel(x_ref, o_ref):
    # Pure vreg copy: identical block shapes in and out, no relayout,
    # unmasked lane-dense stores.
    o_ref[...] = x_ref[...]


def _copy_2d_slab(flat2d):
    """Tiled, pipelined identity copy of a (rows, 128) slab."""
    rows, lanes = flat2d.shape
    itemsize = jnp.dtype(flat2d.dtype).itemsize
    row_bytes = lanes * itemsize

    # Byte-based tile sizing, rows a multiple of 32 (legal sublane multiple
    # for f32 / bf16 / int8 alike).
    target_rows = max(32, (_TARGET_TILE_BYTES // row_bytes) // 32 * 32)

    if rows > target_rows:
        tile_rows = target_rows
    else:
        total_bytes = rows * row_bytes
        if total_bytes >= _SPLIT_MIN_BYTES and rows >= 64:
            # Keep >= 2 grid steps so v7x can shard the "parallel" axis
            # across both TensorCores.
            half = -(-rows // 2)
            tile_rows = -(-half // 32) * 32     # round up to multiple of 32
        else:
            # Single block equal to the full dims -> exempt from (8,128) rule.
            tile_rows = rows

    grid = (pl.cdiv(rows, tile_rows),)

    tile_bytes = tile_rows * row_bytes
    # in + out, double buffered, plus headroom; clamp to the v7x-safe 32 MiB.
    vmem_limit = int(min(max(8 * tile_bytes, 4 << 20), 32 << 20))

    return pl.pallas_call(
        _copy_kernel,
        out_shape=jax.ShapeDtypeStruct((rows, lanes), flat2d.dtype),
        grid=grid,
        in_specs=[pl.BlockSpec((tile_rows, lanes), lambda i: (i, 0))],
        out_specs=pl.BlockSpec((tile_rows, lanes), lambda i: (i, 0)),
        input_output_aliases={0: 0},   # identity copy -> aliasing always safe
        compiler_params=pltpu.CompilerParams(
            dimension_semantics=("parallel",),
            vmem_limit_bytes=vmem_limit,
        ),
        cost_estimate=pl.CostEstimate(
            flops=0,
            transcendentals=0,
            bytes_accessed=2 * rows * lanes * itemsize,
        ),
    )(flat2d)


def _copy_1d_small(flat1d):
    """Identity copy of a tiny 1D tail (< 128 elements) in one full block."""
    n = flat1d.shape[0]
    itemsize = jnp.dtype(flat1d.dtype).itemsize
    return pl.pallas_call(
        _copy_kernel,
        out_shape=jax.ShapeDtypeStruct((n,), flat1d.dtype),
        grid=(1,),
        # Block equals full array dims -> exempt from the (8,128) rule.
        in_specs=[pl.BlockSpec((n,), lambda i: (0,))],
        out_specs=pl.BlockSpec((n,), lambda i: (0,)),
        input_output_aliases={0: 0},
        compiler_params=pltpu.CompilerParams(
            dimension_semantics=("arbitrary",),
        ),
        cost_estimate=pl.CostEstimate(
            flops=0, transcendentals=0, bytes_accessed=2 * n * itemsize
        ),
    )(flat1d)


def pallas_reshape(x, target_shape, materialize=True):
    """Equivalent of Reshape(*target_shape)(x) for a contiguous input.

    materialize=False skips the copy entirely (fastest: reshape is metadata
    only).  materialize=True routes the data through the Pallas identity-copy
    kernel, which is what this assignment exercises.
    """
    numel = int(np.prod(x.shape, dtype=np.int64)) if x.ndim else 1
    out_shape = _resolve_shape(target_shape, numel)

    if numel == 0 or not materialize:
        return jnp.reshape(x, out_shape)

    flat = jnp.reshape(x, (numel,))          # metadata-only in the wrapper
    bulk = (numel // _LANES) * _LANES

    if bulk == numel:
        # Fast path: whole tensor is lane-dense.
        out2d = _copy_2d_slab(jnp.reshape(flat, (numel // _LANES, _LANES)))
        return jnp.reshape(out2d, out_shape)

    # Bulk (tiled, pipelined) + tiny (<128 element) tail -> VMEM stays bounded
    # regardless of input size.
    pieces = []
    if bulk > 0:
        out2d = _copy_2d_slab(jnp.reshape(flat[:bulk], (bulk // _LANES, _LANES)))
        pieces.append(jnp.reshape(out2d, (bulk,)))
    pieces.append(_copy_1d_small(flat[bulk:]))
    out_flat = pieces[0] if len(pieces) == 1 else jnp.concatenate(pieces)
    return jnp.reshape(out_flat, out_shape)


class Reshape:
    """Mirror of the PyTorch module; no parameters."""

    def __init__(self, *args):
        self.shape = args

    def __call__(self, x):
        return pallas_reshape(x, self.shape)


if __name__ == "__main__":
    key = jax.random.PRNGKey(0)

    # Small NCHW-style input, consistent with typical use of Reshape after a conv.
    x = jax.random.normal(key, (2, 4, 16, 16), dtype=jnp.float32)

    # (2, 4, 16, 16) -> (2, 4, 256): main lane-dense copy path.
    module = Reshape(2, 4, -1)
    out = jax.block_until_ready(module(x))
    ref = jnp.reshape(x, (2, 4, 256))
    assert out.shape == (2, 4, 256), out.shape
    assert out.dtype == x.dtype
    np.testing.assert_array_equal(np.asarray(out), np.asarray(ref))

    # Pure (-1,) flatten (exercises -1 resolution).
    out_flat = jax.block_until_ready(Reshape(-1)(x))
    np.testing.assert_array_equal(np.asarray(out_flat), np.asarray(x).reshape(-1))

    # Non-128-multiple element count, < 128 elements -> tail-only path.
    y = jax.random.normal(key, (2, 3, 5), dtype=jnp.float32)
    out_y = jax.block_until_ready(Reshape(5, 6)(y))
    np.testing.assert_array_equal(np.asarray(out_y), np.asarray(y).reshape(5, 6))

    # Non-128-multiple element count, > 128 elements -> bulk + tail split.
    z = jax.random.normal(key, (3, 67), dtype=jnp.float32)   # 201 elements
    out_z = jax.block_until_ready(Reshape(67, 3)(z))
    np.testing.assert_array_equal(np.asarray(out_z), np.asarray(z).reshape(67, 3))

    # 1 MiB tensor -> exercises the >=2-step "parallel" grid (v7x TC sharding).
    w = jax.random.normal(key, (16, 128, 128), dtype=jnp.float32)
    out_w = jax.block_until_ready(Reshape(16, -1)(w))
    np.testing.assert_array_equal(np.asarray(out_w),
                                  np.asarray(w).reshape(16, 128 * 128))

    # Zero-size tensor -> metadata-only short-circuit.
    e = jnp.zeros((0, 7), dtype=jnp.float32)
    out_e = jax.block_until_ready(Reshape(7, 0)(e))
    assert out_e.shape == (7, 0)

    print("KERNEL_OK")
</pallas_src>

<mosaic_0001>
module attributes {stable_mosaic.version = 11 : i64} {
  func.func @_copy_kernel(%arg0: i32, %arg1: memref<16x128xf32, #tpu.memory_space<vmem>>, %arg2: memref<16x128xf32, #tpu.memory_space<vmem>>) attributes {dimension_semantics = [#tpu.dimension_semantics<parallel>], iteration_bounds = array<i64: 1>, scalar_prefetch = 0 : i64, scratch_operands = 0 : i64, tpu.core_type = #tpu.core_type<tc>, window_params = [{transform_indices = @transform_0, window_bounds = array<i64: 16, 128>}, {transform_indices = @transform_1, window_bounds = array<i64: 16, 128>}]} {
    %c0 = arith.constant 0 : index
    %c0_0 = arith.constant 0 : index
    %0 = vector.load %arg1[%c0, %c0_0] : memref<16x128xf32, #tpu.memory_space<vmem>>, vector<16x128xf32>
    %c0_1 = arith.constant 0 : index
    %c0_2 = arith.constant 0 : index
    %1 = vector.load %arg2[%c0_1, %c0_2] : memref<16x128xf32, #tpu.memory_space<vmem>>, vector<16x128xf32>
    tpu.vector_store %arg2[%c0_1, %c0_2], %0 {strides = array<i32>} : memref<16x128xf32, #tpu.memory_space<vmem>>, vector<16x128xf32>,
    return
  }
  func.func @transform_0(%arg0: i32) -> (i32, i32) {
    %c0_i32 = arith.constant 0 : i32
    %c0_i32_0 = arith.constant 0 : i32
    return %arg0, %c0_i32 : i32, i32
  }
  func.func @transform_1(%arg0: i32) -> (i32, i32) {
    %c0_i32 = arith.constant 0 : i32
    %c0_i32_0 = arith.constant 0 : i32
    return %arg0, %c0_i32 : i32, i32
  }
}

</mosaic_0001>

<llo_original>
// kernel: tpu_custom_call.1
$region0: #{tpu_custom_call.1}
  #allocation0 [shape = 'u32[]', space=smem, size = 0x4, offset = 0x4, fixed_abs, tag = 'smem constant byte address 0x4 - core index']
  #allocation1 [shape = 'u32[72,128]{1,0:T(1,128)}', space=vmem, size = 0x9000, scoped, tag = 'internal scratch']
  %s0 = inlined_call_operand.hbm [shape: f32[16,128], index: 0, kind: input, shape index: {}, may-alias: {0,1}]
  %s1 = inlined_call_operand.hbm [shape: f32[16,128], index: 1, kind: output, shape index: {}, may-alias: {0,1}]
  %s2 = sld [smem:[#allocation0]]
  $region18: #{tpu_custom_call.1} parent=0
    _
  %s4 = ssub.s32 1, %s2
  %s5 = scalar_select 0, %s4, %s2
  $region1: #{tpu_custom_call.1} parent=0
    #allocation2 [shape = 'u8[8192]{0}', space=vmem, size = 0x2000, scoped, tag = 'input window, operand 0, single buffered']
    #allocation3 [shape = 's32[1]{0}', space=sflag, size = 0x4, scoped, tag = 'scoped memory for tpu_custom_call.1']
    #allocation4 [shape = 's32[1]{0}', space=sflag, size = 0x4, scoped, tag = 'scoped memory for tpu_custom_call.1']
    #allocation5 [shape = 'u8[8192]{0}', space=vmem, size = 0x2000, scoped, tag = 'output window, operand 0, single buffered']
    %6 = vsyncpa [#allocation3], 0
    %7 = vsyncpa [#allocation4], 0
    // Predicated region
    $region2: #{tpu_custom_call.1} parent=1 // pred_check
      _
    $region3: #{tpu_custom_call.1} parent=1 // pred_check_branch
      %9 = sbr.rel (0) target = $region5
    $region4: #{tpu_custom_call.1} parent=1 // pred_region
      %11 = vsyncadd [#allocation3], 0
      %s12 = sshll.u32 %s0, 4
      %s13 = int_to_ptr.hbm [resolvable:$true] %s12
      %s14 = sshll.u32 [#allocation2], 4
      %s15 = int_to_ptr.vmem [resolvable:$true] %s14
      %20 = dma.hbm_to_vmem [thread:$0]  %s13, 256, %s15, [#allocation3], 128, 128, 8
    $region5: #{tpu_custom_call.1} parent=1 // pred_fallthru
      _
    // Predicated region
    $region6: #{tpu_custom_call.1} parent=1 // pred_check
      _
    $region7: #{tpu_custom_call.1} parent=1 // pred_check_branch
      %22 = sbr.rel (0) target = $region9
    $region8: #{tpu_custom_call.1} parent=1 // pred_region
      %24 = dma.done [#allocation3], 256
    $region9: #{tpu_custom_call.1} parent=1 // pred_fallthru
      _
    %v25 = vld [vmem:[#allocation2] sm:$0xff]
    %v26 = vld [vmem:[#allocation2 + $0x8] sm:$0xff]
    %27 = vst [vmem:[#allocation5] sm:$0xff] %v25
    %28 = vst [vmem:[#allocation5 + $0x8] sm:$0xff] %v26
    // Predicated region
    $region10: #{tpu_custom_call.1} parent=1 // pred_check
      _
    $region11: #{tpu_custom_call.1} parent=1 // pred_check_branch
      %30 = sbr.rel (0) target = $region13
    $region12: #{tpu_custom_call.1} parent=1 // pred_region
      %32 = vsyncadd [#allocation4], 0
      %s33 = sshll.u32 [#allocation5], 4
      %s34 = int_to_ptr.vmem [resolvable:$true] %s33
      %s35 = sshll.u32 %s1, 4
      %s36 = int_to_ptr.hbm [resolvable:$true] %s35
      %41 = dma.vmem_to_hbm [thread:$0]  %s34, 256, %s36, [#allocation4], 128, 128, 8
    $region13: #{tpu_custom_call.1} parent=1 // pred_fallthru
      _
    // Predicated region
    $region14: #{tpu_custom_call.1} parent=1 // pred_check
      _
    $region15: #{tpu_custom_call.1} parent=1 // pred_check_branch
      %43 = sbr.rel (0) target = $region17
    $region16: #{tpu_custom_call.1} parent=1 // pred_region
      %45 = dma.done [#allocation4], 256
    $region17: #{tpu_custom_call.1} parent=1 // pred_fallthru
      _
    %46 = vsyncpa [#allocation3], 1
    %47 = vsyncpa [#allocation4], 1

</llo_original>
